<compile_context>
chip_gen: v6e
topology: v6e:2x2x1
jax: 0.10.0
libtpu: 0.0.40
codegen_flags: <defaults>
</compile_context>

<pallas_src>
import functools

import jax
import jax.numpy as jnp
from jax.experimental import pallas as pl
from jax.experimental.pallas import tpu as pltpu


def _sublane_align(dtype) -> int:
    """Minimum row-tile granularity for a dtype (sublane packing)."""
    itemsize = jnp.dtype(dtype).itemsize
    return max(8, 32 // max(itemsize, 1))   # f32 -> 8, bf16 -> 16, u8/bool -> 32


def _pick_tile_h(H: int, row_align: int, max_rows: int = 128) -> int:
    """Largest divisor of H that is a multiple of row_align and <= max_rows.

    Falls back to full H (a full-extent block is always legal)."""
    t = (max_rows // row_align) * row_align
    while t >= row_align:
        if H % t == 0:
            return t
        t -= row_align
    return H


def _make_fused_kernel(inv_n: float, tile_h: int, W: int):
    """Fused sigmoid + per-(b,c) intersection/union/BCE sums, tiled over H rows."""
    grouped = (tile_h % 8 == 0)

    def accumulate(acc_ref, vals):
        if grouped:
            # (tile_h, W) -> (tile_h//8, 8, W); layout-preserving reshape, sum over
            # leading dim is pure VALU vreg adds (no XLU in the inner loop).
            acc_ref[...] += jnp.sum(vals.reshape(tile_h // 8, 8, W), axis=0)
        else:
            acc_ref[0:1, :] += jnp.sum(vals, axis=0, keepdims=True)

    def kernel(x_ref, y_ref, s_ref, i_ref, u_ref, b_ref, i_acc, u_acc, b_acc):
        h = pl.program_id(1)                       # row-tile index (reduction axis)

        # ---- init per-(b,c) accumulators on the first row tile ----------------
        @pl.when(h == 0)
        def _():
            i_acc[...] = jnp.zeros_like(i_acc)
            u_acc[...] = jnp.zeros_like(u_acc)
            b_acc[...] = jnp.zeros_like(b_acc)

        x = x_ref[0].astype(jnp.float32)           # (tile_h, W) refiner logits
        y = y_ref[0].astype(jnp.float32)           # (tile_h, W) labels (native narrow dtype)

        # ---- softplus first, then EXACT sigmoid s = exp(x - softplus(x)) ------
        sp = jnp.maximum(x, 0.0) + jnp.log(1.0 + jnp.exp(-jnp.abs(x)))
        s = jnp.exp(x - sp)
        s_ref[0] = s.astype(s_ref.dtype)           # bf16 store -> half the write traffic

        # ---- IoU partial sums.  (x > 0)  ==  (sigmoid(x) > 0.5) ----------------
        pred = (x > 0.0).astype(jnp.float32)
        gt = (y > 0.5).astype(jnp.float32)
        accumulate(i_acc, pred * gt)
        accumulate(u_acc, ((pred + gt) > 0.5).astype(jnp.float32))

        # ---- BCE from logits: softplus(x) - x*y  (== BCELoss(sigmoid(x), y)) ---
        accumulate(b_acc, sp - x * y)

        # ---- finalize on the last row tile of this (b,c[,split]) ---------------
        @pl.when(h == pl.num_programs(1) - 1)
        def _():
            def total(acc_ref):
                v = jnp.sum(acc_ref[...], axis=-1, keepdims=True)   # (8, 1) lane reduce
                return jnp.sum(v, axis=0, keepdims=True)            # (1, 1) sublane reduce

            i_ref[...] = jnp.broadcast_to(total(i_acc)[:, :, None], i_ref.shape)
            u_ref[...] = jnp.broadcast_to(total(u_acc)[:, :, None], u_ref.shape)
            b_ref[...] = jnp.broadcast_to((total(b_acc) * inv_n)[:, :, None], b_ref.shape)

    return kernel


@functools.partial(jax.jit, static_argnums=(2, 3, 4))
def _fused_stats(score_logits, labels, tile_h, n_split, out_dtype):
    B, C, H, W = score_logits.shape
    BC = B * C
    BCS = BC * n_split
    Hs = H // n_split

    x2 = score_logits.reshape(BCS, Hs, W)
    # Keep labels in their native narrow dtype — no f32 up-cast pre-pass in HBM.
    y_nat = labels.astype(jnp.uint8) if labels.dtype == jnp.bool_ else labels
    y2 = y_nat.reshape(BCS, Hs, W)

    kernel = _make_fused_kernel(1.0 / float(BC * H * W), tile_h, W)

    # Actual double-buffered VMEM need (+ slack), clamped well below v7x's 64 MiB.
    per_step = tile_h * W * (jnp.dtype(x2.dtype).itemsize
                             + jnp.dtype(y2.dtype).itemsize
                             + jnp.dtype(out_dtype).itemsize)
    need = 2 * per_step + 3 * 8 * W * 4 + 3 * 2 * 8 * 128 * 4 + (4 << 20)
    vmem_bytes = int(min(max(need, 16 << 20), 32 << 20))

    s2, i_pad, u_pad, b_pad = pl.pallas_call(
        kernel,
        out_shape=(
            jax.ShapeDtypeStruct((BCS, Hs, W), out_dtype),     # s = sigmoid(logits), bf16
            jax.ShapeDtypeStruct((BCS, 8, 128), jnp.float32),  # intersection sums
            jax.ShapeDtypeStruct((BCS, 8, 128), jnp.float32),  # union sums
            jax.ShapeDtypeStruct((BCS, 8, 128), jnp.float32),  # BCE partials (pre-scaled)
        ),
        grid_spec=pltpu.PrefetchScalarGridSpec(
            num_scalar_prefetch=0,
            grid=(BCS, Hs // tile_h),               # (parallel, arbitrary/reduction)
            in_specs=[
                pl.BlockSpec((1, tile_h, W), lambda bc, h: (bc, h, 0)),
                pl.BlockSpec((1, tile_h, W), lambda bc, h: (bc, h, 0)),
            ],
            out_specs=(
                pl.BlockSpec((1, tile_h, W), lambda bc, h: (bc, h, 0)),
                pl.BlockSpec((1, 8, 128), lambda bc, h: (bc, 0, 0)),
                pl.BlockSpec((1, 8, 128), lambda bc, h: (bc, 0, 0)),
                pl.BlockSpec((1, 8, 128), lambda bc, h: (bc, 0, 0)),
            ),
            scratch_shapes=[
                pltpu.VMEM((8, W), jnp.float32),    # intersection sublane-group partials
                pltpu.VMEM((8, W), jnp.float32),    # union partials
                pltpu.VMEM((8, W), jnp.float32),    # BCE partials
            ],
        ),
        compiler_params=pltpu.CompilerParams(
            dimension_semantics=("parallel", "arbitrary"),
            vmem_limit_bytes=vmem_bytes,
        ),
        # NOTE: if an xprof trace still shows exposed DMA at step boundaries,
        # add pipeline_mode=pl.Buffered(3) to the two input BlockSpecs.
    )(x2, y2)

    s = s2.reshape(B, C, H, W)
    i_sum = i_pad[:, 0, 0].reshape(BC, n_split).sum(axis=-1)
    u_sum = u_pad[:, 0, 0].reshape(BC, n_split).sum(axis=-1)
    # torch: iou = i/u ; iou[isinf] = 0.0 ; iou[isnan] = 1.0
    iou = jnp.where(
        u_sum > 0.0,
        i_sum / jnp.maximum(u_sum, 1.0),
        jnp.where(i_sum > 0.0, 0.0, 1.0),
    ).reshape(B, C)
    segloss = jnp.sum(b_pad[:, 0, 0])               # partials already scaled by 1/N
    mean_iou = jnp.mean(iou)
    return s, iou, segloss, mean_iou


def trainer_forward_stats(score_logits: jax.Array, labels: jax.Array,
                          tile_h: int | None = None, out_dtype=jnp.bfloat16):
    """Pallas replacement for the computable core of TrainerModel.forward.

    score_logits : (B, C, H, W) refiner output logits (pre-sigmoid), already at
                   target resolution (interpolate is external glue).
    labels       : (B, C, H, W) ground-truth masks y, in their native dtype
                   (uint8 / bool / bf16 / f32) — fed to the kernel un-upcast.
    Returns (s, iou, stats_dict) with device-resident values (no host syncs).
    """
    B, C, H, W = score_logits.shape
    BC = B * C

    # v7x has 2 TensorCores: guarantee >= 2 units on the parallel grid axis by
    # splitting H into independent halves when only one (b,c) object exists.
    n_split = 1 if BC >= 2 else (2 if H % 2 == 0 else 1)
    Hs = H // n_split

    y_dtype = jnp.uint8 if labels.dtype == jnp.bool_ else labels.dtype
    row_align = max(_sublane_align(score_logits.dtype),
                    _sublane_align(y_dtype),
                    _sublane_align(out_dtype))

    if tile_h is None:
        tile_h = _pick_tile_h(Hs, row_align)        # e.g. 480x864 masks -> tile_h=96
    assert Hs % tile_h == 0 and (tile_h % row_align == 0 or tile_h == Hs), "bad row tile"

    s, iou, segloss, mean_iou = _fused_stats(score_logits, labels, tile_h, n_split, out_dtype)

    # Mirrors the stats dict TrainerModel.forward builds (single iteration: n=1).
    stats = {
        "stats/segloss": segloss,        # device scalar
        "stats/flowloss": 0.0,           # flowlosses never updated in forward()
        "stats/accuracy": mean_iou,      # iter_acc / n with acc.mean()
        "stats/fcache_hits": 0,          # no tmodel cache in this synthetic run
    }
    return s, iou, stats


# TODO(synk): feature_extractor / feature_extractor_flow / augmenter / per-object
#             Discriminator (disc_params) / refiner (seg_network) / SpatialTransformer
#             warp / interpolate are constructor-injected modules with no definition
#             in the reference source; they cannot be translated here.
# TODO(synk): loss.backward() (gradient step) and the .pth target-model cache I/O
#             are training/host-side side effects with no Pallas equivalent.


if __name__ == "__main__":
    # Small demo shapes; real model uses 480x864 masks (tile only H, keep W full).
    B, C, H, W = 2, 2, 64, 128

    key = jax.random.PRNGKey(0)
    k_logits, k_labels = jax.random.split(key)
    score_logits = 3.0 * jax.random.normal(k_logits, (B, C, H, W), dtype=jnp.float32)
    # Masks in their native narrow dtype (uint8), as a real dataloader would supply.
    labels = jax.random.bernoulli(k_labels, p=0.4, shape=(B, C, H, W)).astype(jnp.uint8)

    # tile_h=32 -> grid (B*C, 2): exercises the pipelined multi-step reduction path.
    s, iou, stats = trainer_forward_stats(score_logits, labels, tile_h=32)
    jax.block_until_ready((s, iou, stats["stats/segloss"], stats["stats/accuracy"]))

    # ---- Sanity checks against plain-JAX reference of the same math. ------------
    s_ref = jax.nn.sigmoid(score_logits)
    # exact sigmoid in-kernel; only bf16 output rounding remains.
    assert float(jnp.max(jnp.abs(s.astype(jnp.float32) - s_ref))) < 1e-2, "sigmoid mismatch"

    y_f = labels.astype(jnp.float32)
    pred = (s_ref > 0.5).astype(jnp.float32)
    gt = (y_f > 0.5).astype(jnp.float32)
    inter = jnp.sum(pred * gt, axis=(-2, -1))
    uni = jnp.sum(((pred + gt) > 0.5).astype(jnp.float32), axis=(-2, -1))
    iou_ref = jnp.where(uni > 0.0, inter / jnp.maximum(uni, 1.0),
                        jnp.where(inter > 0.0, 0.0, 1.0))
    assert jnp.allclose(iou, iou_ref, atol=1e-5), "iou mismatch"

    x = score_logits
    bce_ref = jnp.mean(jnp.maximum(x, 0.0) + jnp.log1p(jnp.exp(-jnp.abs(x))) - x * y_f)
    assert jnp.allclose(stats["stats/segloss"], bce_ref, rtol=1e-4, atol=1e-5), "bce mismatch"

    # ---- Exercise the BC==1 path (H split across the parallel axis for v7x). ----
    s1, iou1, stats1 = trainer_forward_stats(score_logits[:1, :1], labels[:1, :1])
    jax.block_until_ready((s1, iou1, stats1["stats/segloss"]))
    assert jnp.allclose(iou1, iou_ref[:1, :1], atol=1e-5), "split-iou mismatch"
    bce1_ref = jnp.mean(jnp.maximum(x[:1, :1], 0.0)
                        + jnp.log1p(jnp.exp(-jnp.abs(x[:1, :1])))
                        - x[:1, :1] * y_f[:1, :1])
    assert jnp.allclose(stats1["stats/segloss"], bce1_ref, rtol=1e-4, atol=1e-5), "split-bce mismatch"

    acc = float(stats["stats/accuracy"])
    assert 0.0 <= acc <= 1.0 and bool(jnp.isfinite(stats["stats/segloss"]))

    print("KERNEL_OK")
</pallas_src>

<mosaic_0001>
module attributes {stable_mosaic.version = 11 : i64} {
  func.func @kernel(%arg0: i32, %arg1: i32, %arg2: memref<1x32x128xf32, #tpu.memory_space<vmem>>, %arg3: memref<1x32x128xi8, #tpu.memory_space<vmem>>, %arg4: memref<1x32x128xbf16, #tpu.memory_space<vmem>>, %arg5: memref<1x8x128xf32, #tpu.memory_space<vmem>>, %arg6: memref<1x8x128xf32, #tpu.memory_space<vmem>>, %arg7: memref<1x8x128xf32, #tpu.memory_space<vmem>>, %arg8: memref<8x128xf32, #tpu.memory_space<vmem>>, %arg9: memref<8x128xf32, #tpu.memory_space<vmem>>, %arg10: memref<8x128xf32, #tpu.memory_space<vmem>>) attributes {dimension_semantics = [#tpu.dimension_semantics<parallel>, #tpu.dimension_semantics<arbitrary>], iteration_bounds = array<i64: 4, 2>, scalar_prefetch = 0 : i64, scratch_operands = 3 : i64, tpu.core_type = #tpu.core_type<tc>, window_params = [{transform_indices = @transform_0, window_bounds = array<i64: 1, 32, 128>}, {transform_indices = @transform_1, window_bounds = array<i64: 1, 32, 128>}, {transform_indices = @transform_2, window_bounds = array<i64: 1, 32, 128>}, {transform_indices = @transform_3, window_bounds = array<i64: 1, 8, 128>}, {transform_indices = @transform_4, window_bounds = array<i64: 1, 8, 128>}, {transform_indices = @transform_5, window_bounds = array<i64: 1, 8, 128>}]} {
    %c0_i32 = arith.constant 0 : i32
    %0 = arith.cmpi eq, %arg1, %c0_i32 : i32
    %1 = arith.extui %0 : i1 to i32
    %c0_i32_0 = arith.constant 0 : i32
    %2 = arith.cmpi ne, %1, %c0_i32_0 : i32
    scf.if %2 {
      %cst_30 = arith.constant 0.000000e+00 : f32
      %58 = vector.broadcast %cst_30 : f32 to vector<8x128xf32>
      %c0_31 = arith.constant 0 : index
      %c0_32 = arith.constant 0 : index
      %59 = vector.load %arg8[%c0_31, %c0_32] : memref<8x128xf32, #tpu.memory_space<vmem>>, vector<8x128xf32>
      tpu.vector_store %arg8[%c0_31, %c0_32], %58 {strides = array<i32>} : memref<8x128xf32, #tpu.memory_space<vmem>>, vector<8x128xf32>,
      %cst_33 = arith.constant 0.000000e+00 : f32
      %60 = vector.broadcast %cst_33 : f32 to vector<8x128xf32>
      %c0_34 = arith.constant 0 : index
      %c0_35 = arith.constant 0 : index
      %61 = vector.load %arg9[%c0_34, %c0_35] : memref<8x128xf32, #tpu.memory_space<vmem>>, vector<8x128xf32>
      tpu.vector_store %arg9[%c0_34, %c0_35], %60 {strides = array<i32>} : memref<8x128xf32, #tpu.memory_space<vmem>>, vector<8x128xf32>,
      %cst_36 = arith.constant 0.000000e+00 : f32
      %62 = vector.broadcast %cst_36 : f32 to vector<8x128xf32>
      %c0_37 = arith.constant 0 : index
      %c0_38 = arith.constant 0 : index
      %63 = vector.load %arg10[%c0_37, %c0_38] : memref<8x128xf32, #tpu.memory_space<vmem>>, vector<8x128xf32>
      tpu.vector_store %arg10[%c0_37, %c0_38], %62 {strides = array<i32>} : memref<8x128xf32, #tpu.memory_space<vmem>>, vector<8x128xf32>,
    } else {
    }
    %c0 = arith.constant 0 : index
    %c0_1 = arith.constant 0 : index
    %c0_2 = arith.constant 0 : index
    %3 = vector.load %arg2[%c0, %c0_1, %c0_2] : memref<1x32x128xf32, #tpu.memory_space<vmem>>, vector<1x32x128xf32>
    %4 = vector.shape_cast %3 : vector<1x32x128xf32> to vector<32x128xf32>
    %c0_3 = arith.constant 0 : index
    %c0_4 = arith.constant 0 : index
    %c0_5 = arith.constant 0 : index
    %5 = vector.load %arg3[%c0_3, %c0_4, %c0_5] : memref<1x32x128xi8, #tpu.memory_space<vmem>>, vector<1x32x128xi8>
    %6 = vector.shape_cast %5 : vector<1x32x128xi8> to vector<32x128xi8>
    %7 = arith.uitofp %6 : vector<32x128xi8> to vector<32x128xf32>
    %cst = arith.constant 0.000000e+00 : f32
    %8 = vector.broadcast %cst : f32 to vector<32x128xf32>
    %9 = arith.maximumf %4, %8 : vector<32x128xf32>
    %10 = math.absf %4 : vector<32x128xf32>
    %cst_6 = arith.constant 0.000000e+00 : f32
    %11 = vector.broadcast %cst_6 : f32 to vector<32x128xf32>
    %12 = arith.subf %11, %10 : vector<32x128xf32>
    %13 = math.exp %12 : vector<32x128xf32>
    %cst_7 = arith.constant 1.000000e+00 : f32
    %14 = vector.broadcast %cst_7 : f32 to vector<32x128xf32>
    %15 = arith.addf %14, %13 : vector<32x128xf32>
    %16 = math.log %15 : vector<32x128xf32>
    %17 = arith.addf %9, %16 : vector<32x128xf32>
    %18 = arith.subf %4, %17 : vector<32x128xf32>
    %19 = math.exp %18 : vector<32x128xf32>
    %20 = arith.truncf %19 : vector<32x128xf32> to vector<32x128xbf16>
    %c0_8 = arith.constant 0 : index
    %c0_9 = arith.constant 0 : index
    %c0_10 = arith.constant 0 : index
    %21 = vector.load %arg4[%c0_8, %c0_9, %c0_10] : memref<1x32x128xbf16, #tpu.memory_space<vmem>>, vector<1x32x128xbf16>
    %22 = vector.shape_cast %21 : vector<1x32x128xbf16> to vector<32x128xbf16>
    %23 = vector.shape_cast %20 : vector<32x128xbf16> to vector<1x32x128xbf16>
    tpu.vector_store %arg4[%c0_8, %c0_9, %c0_10], %23 {strides = array<i32>} : memref<1x32x128xbf16, #tpu.memory_space<vmem>>, vector<1x32x128xbf16>,
    %cst_11 = arith.constant 0.000000e+00 : f32
    %24 = vector.broadcast %cst_11 : f32 to vector<32x128xf32>
    %25 = arith.cmpf ogt, %4, %24 : vector<32x128xf32>
    %26 = arith.extui %25 : vector<32x128xi1> to vector<32x128xi32>
    %27 = arith.sitofp %26 : vector<32x128xi32> to vector<32x128xf32>
    %cst_12 = arith.constant 5.000000e-01 : f32
    %28 = vector.broadcast %cst_12 : f32 to vector<32x128xf32>
    %29 = arith.cmpf ogt, %7, %28 : vector<32x128xf32>
    %30 = arith.extui %29 : vector<32x128xi1> to vector<32x128xi32>
    %31 = arith.sitofp %30 : vector<32x128xi32> to vector<32x128xf32>
    %32 = arith.mulf %27, %31 : vector<32x128xf32>
    %c0_13 = arith.constant 0 : index
    %c0_14 = arith.constant 0 : index
    %33 = vector.load %arg8[%c0_13, %c0_14] : memref<8x128xf32, #tpu.memory_space<vmem>>, vector<8x128xf32>
    %34 = vector.shape_cast %32 : vector<32x128xf32> to vector<4x8x128xf32>
    %cst_15 = arith.constant dense<0.000000e+00> : vector<8x128xf32>
    %35 = vector.multi_reduction <add>, %34, %cst_15 [0] : vector<4x8x128xf32> to vector<8x128xf32>
    %36 = arith.addf %33, %35 : vector<8x128xf32>
    %c0_16 = arith.constant 0 : index
    %c0_17 = arith.constant 0 : index
    %37 = vector.load %arg8[%c0_16, %c0_17] : memref<8x128xf32, #tpu.memory_space<vmem>>, vector<8x128xf32>
    tpu.vector_store %arg8[%c0_16, %c0_17], %36 {strides = array<i32>} : memref<8x128xf32, #tpu.memory_space<vmem>>, vector<8x128xf32>,
    %38 = arith.addf %27, %31 : vector<32x128xf32>
    %cst_18 = arith.constant 5.000000e-01 : f32
    %39 = vector.broadcast %cst_18 : f32 to vector<32x128xf32>
    %40 = arith.cmpf ogt, %38, %39 : vector<32x128xf32>
    %41 = arith.extui %40 : vector<32x128xi1> to vector<32x128xi32>
    %42 = arith.sitofp %41 : vector<32x128xi32> to vector<32x128xf32>
    %c0_19 = arith.constant 0 : index
    %c0_20 = arith.constant 0 : index
    %43 = vector.load %arg9[%c0_19, %c0_20] : memref<8x128xf32, #tpu.memory_space<vmem>>, vector<8x128xf32>
    %44 = vector.shape_cast %42 : vector<32x128xf32> to vector<4x8x128xf32>
    %cst_21 = arith.constant dense<0.000000e+00> : vector<8x128xf32>
    %45 = vector.multi_reduction <add>, %44, %cst_21 [0] : vector<4x8x128xf32> to vector<8x128xf32>
    %46 = arith.addf %43, %45 : vector<8x128xf32>
    %c0_22 = arith.constant 0 : index
    %c0_23 = arith.constant 0 : index
    %47 = vector.load %arg9[%c0_22, %c0_23] : memref<8x128xf32, #tpu.memory_space<vmem>>, vector<8x128xf32>
    tpu.vector_store %arg9[%c0_22, %c0_23], %46 {strides = array<i32>} : memref<8x128xf32, #tpu.memory_space<vmem>>, vector<8x128xf32>,
    %48 = arith.mulf %4, %7 : vector<32x128xf32>
    %49 = arith.subf %17, %48 : vector<32x128xf32>
    %c0_24 = arith.constant 0 : index
    %c0_25 = arith.constant 0 : index
    %50 = vector.load %arg10[%c0_24, %c0_25] : memref<8x128xf32, #tpu.memory_space<vmem>>, vector<8x128xf32>
    %51 = vector.shape_cast %49 : vector<32x128xf32> to vector<4x8x128xf32>
    %cst_26 = arith.constant dense<0.000000e+00> : vector<8x128xf32>
    %52 = vector.multi_reduction <add>, %51, %cst_26 [0] : vector<4x8x128xf32> to vector<8x128xf32>
    %53 = arith.addf %50, %52 : vector<8x128xf32>
    %c0_27 = arith.constant 0 : index
    %c0_28 = arith.constant 0 : index
    %54 = vector.load %arg10[%c0_27, %c0_28] : memref<8x128xf32, #tpu.memory_space<vmem>>, vector<8x128xf32>
    tpu.vector_store %arg10[%c0_27, %c0_28], %53 {strides = array<i32>} : memref<8x128xf32, #tpu.memory_space<vmem>>, vector<8x128xf32>,
    %c1_i32 = arith.constant 1 : i32
    %55 = arith.cmpi eq, %arg1, %c1_i32 : i32
    %56 = arith.extui %55 : i1 to i32
    %c0_i32_29 = arith.constant 0 : i32
    %57 = arith.cmpi ne, %56, %c0_i32_29 : i32
    scf.if %57 {
      %c0_30 = arith.constant 0 : index
      %c0_31 = arith.constant 0 : index
      %58 = vector.load %arg8[%c0_30, %c0_31] : memref<8x128xf32, #tpu.memory_space<vmem>>, vector<8x128xf32>
      %cst_32 = arith.constant dense<0.000000e+00> : vector<8xf32>
      %59 = vector.multi_reduction <add>, %58, %cst_32 [1] : vector<8x128xf32> to vector<8xf32>
      %60 = vector.shape_cast %59 : vector<8xf32> to vector<8x1xf32>
      %cst_33 = arith.constant dense<0.000000e+00> : vector<1xf32>
      %61 = vector.multi_reduction <add>, %60, %cst_33 [0] : vector<8x1xf32> to vector<1xf32>
      %62 = vector.shape_cast %61 : vector<1xf32> to vector<1x1xf32>
      %63 = vector.shape_cast %62 : vector<1x1xf32> to vector<1x1x1xf32>
      %64 = vector.shape_cast %63 : vector<1x1x1xf32> to vector<1x1x1xf32>
      %65 = vector.broadcast %64 : vector<1x1x1xf32> to vector<1x8x128xf32>
      %c0_34 = arith.constant 0 : index
      %c0_35 = arith.constant 0 : index
      %c0_36 = arith.constant 0 : index
      %66 = vector.load %arg5[%c0_34, %c0_35, %c0_36] : memref<1x8x128xf32, #tpu.memory_space<vmem>>, vector<1x8x128xf32>
      tpu.vector_store %arg5[%c0_34, %c0_35, %c0_36], %65 {strides = array<i32>} : memref<1x8x128xf32, #tpu.memory_space<vmem>>, vector<1x8x128xf32>,
      %c0_37 = arith.constant 0 : index
      %c0_38 = arith.constant 0 : index
      %67 = vector.load %arg9[%c0_37, %c0_38] : memref<8x128xf32, #tpu.memory_space<vmem>>, vector<8x128xf32>
      %cst_39 = arith.constant dense<0.000000e+00> : vector<8xf32>
      %68 = vector.multi_reduction <add>, %67, %cst_39 [1] : vector<8x128xf32> to vector<8xf32>
      %69 = vector.shape_cast %68 : vector<8xf32> to vector<8x1xf32>
      %cst_40 = arith.constant dense<0.000000e+00> : vector<1xf32>
      %70 = vector.multi_reduction <add>, %69, %cst_40 [0] : vector<8x1xf32> to vector<1xf32>
      %71 = vector.shape_cast %70 : vector<1xf32> to vector<1x1xf32>
      %72 = vector.shape_cast %71 : vector<1x1xf32> to vector<1x1x1xf32>
      %73 = vector.shape_cast %72 : vector<1x1x1xf32> to vector<1x1x1xf32>
      %74 = vector.broadcast %73 : vector<1x1x1xf32> to vector<1x8x128xf32>
      %c0_41 = arith.constant 0 : index
      %c0_42 = arith.constant 0 : index
      %c0_43 = arith.constant 0 : index
      %75 = vector.load %arg6[%c0_41, %c0_42, %c0_43] : memref<1x8x128xf32, #tpu.memory_space<vmem>>, vector<1x8x128xf32>
      tpu.vector_store %arg6[%c0_41, %c0_42, %c0_43], %74 {strides = array<i32>} : memref<1x8x128xf32, #tpu.memory_space<vmem>>, vector<1x8x128xf32>,
      %c0_44 = arith.constant 0 : index
      %c0_45 = arith.constant 0 : index
      %76 = vector.load %arg10[%c0_44, %c0_45] : memref<8x128xf32, #tpu.memory_space<vmem>>, vector<8x128xf32>
      %cst_46 = arith.constant dense<0.000000e+00> : vector<8xf32>
      %77 = vector.multi_reduction <add>, %76, %cst_46 [1] : vector<8x128xf32> to vector<8xf32>
      %78 = vector.shape_cast %77 : vector<8xf32> to vector<8x1xf32>
      %cst_47 = arith.constant dense<0.000000e+00> : vector<1xf32>
      %79 = vector.multi_reduction <add>, %78, %cst_47 [0] : vector<8x1xf32> to vector<1xf32>
      %80 = vector.shape_cast %79 : vector<1xf32> to vector<1x1xf32>
      %cst_48 = arith.constant 3.05175781E-5 : f32
      %81 = vector.broadcast %cst_48 : f32 to vector<1x1xf32>
      %82 = arith.mulf %80, %81 : vector<1x1xf32>
      %83 = vector.shape_cast %82 : vector<1x1xf32> to vector<1x1x1xf32>
      %84 = vector.shape_cast %83 : vector<1x1x1xf32> to vector<1x1x1xf32>
      %85 = vector.broadcast %84 : vector<1x1x1xf32> to vector<1x8x128xf32>
      %c0_49 = arith.constant 0 : index
      %c0_50 = arith.constant 0 : index
      %c0_51 = arith.constant 0 : index
      %86 = vector.load %arg7[%c0_49, %c0_50, %c0_51] : memref<1x8x128xf32, #tpu.memory_space<vmem>>, vector<1x8x128xf32>
      tpu.vector_store %arg7[%c0_49, %c0_50, %c0_51], %85 {strides = array<i32>} : memref<1x8x128xf32, #tpu.memory_space<vmem>>, vector<1x8x128xf32>,
    } else {
    }
    return
  }
  func.func @transform_0(%arg0: i32, %arg1: i32) -> (i32, i32, i32) {
    %c0_i32 = arith.constant 0 : i32
    %c0_i32_0 = arith.constant 0 : i32
    return %arg0, %arg1, %c0_i32 : i32, i32, i32
  }
  func.func @transform_1(%arg0: i32, %arg1: i32) -> (i32, i32, i32) {
    %c0_i32 = arith.constant 0 : i32
    %c0_i32_0 = arith.constant 0 : i32
    return %arg0, %arg1, %c0_i32 : i32, i32, i32
  }
  func.func @transform_2(%arg0: i32, %arg1: i32) -> (i32, i32, i32) {
    %c0_i32 = arith.constant 0 : i32
    %c0_i32_0 = arith.constant 0 : i32
    return %arg0, %arg1, %c0_i32 : i32, i32, i32
  }
  func.func @transform_3(%arg0: i32, %arg1: i32) -> (i32, i32, i32) {
    %c0_i32 = arith.constant 0 : i32
    %c0_i32_0 = arith.constant 0 : i32
    %c0_i32_1 = arith.constant 0 : i32
    return %arg0, %c0_i32, %c0_i32_0 : i32, i32, i32
  }
  func.func @transform_4(%arg0: i32, %arg1: i32) -> (i32, i32, i32) {
    %c0_i32 = arith.constant 0 : i32
    %c0_i32_0 = arith.constant 0 : i32
    %c0_i32_1 = arith.constant 0 : i32
    return %arg0, %c0_i32, %c0_i32_0 : i32, i32, i32
  }
  func.func @transform_5(%arg0: i32, %arg1: i32) -> (i32, i32, i32) {
    %c0_i32 = arith.constant 0 : i32
    %c0_i32_0 = arith.constant 0 : i32
    %c0_i32_1 = arith.constant 0 : i32
    return %arg0, %c0_i32, %c0_i32_0 : i32, i32, i32
  }
}

</mosaic_0001>

<llo_original>
// kernel: _fused_stats.1
$region0: #{_fused_stats.1}
  #allocation0 [shape = 'u32[]', space=smem, size = 0x4, offset = 0x4, fixed_abs, tag = 'smem constant byte address 0x4 - core index']
  #allocation1 [shape = 'u32[144,128]{1,0:T(1,128)}', space=vmem, size = 0x12000, scoped, tag = 'internal scratch']
  #allocation2 [shape = 'f32[8,128]{1,0:T(8,128)}', space=vmem, size = 0x1000, scoped, tag = 'scratch operand']
  #allocation3 [shape = 'f32[8,128]{1,0:T(8,128)}', space=vmem, size = 0x1000, scoped, tag = 'scratch operand']
  #allocation4 [shape = 'f32[8,128]{1,0:T(8,128)}', space=vmem, size = 0x1000, scoped, tag = 'scratch operand']
  %s0 = inlined_call_operand.hbm [shape: f32[4,64,128], index: 0, kind: input, shape index: {}]
  %s1 = inlined_call_operand.hbm [shape: u8[4,64,128], index: 1, kind: input, shape index: {}]
  %s2 = inlined_call_operand.hbm [shape: bf16[4,64,128], index: 2, kind: output, shape index: {0}]
  %s3 = inlined_call_operand.vmem [shape: f32[4,8,128], index: 3, kind: output, shape index: {1}]
  %s4 = inlined_call_operand.vmem [shape: f32[4,8,128], index: 4, kind: output, shape index: {2}]
  %s5 = inlined_call_operand.vmem [shape: f32[4,8,128], index: 5, kind: output, shape index: {3}]
  %6 = xla_tuple %s2, %s3, %s4, %s5
  %s7 = sld [smem:[#allocation0]]
  $region81: #{_fused_stats.1} parent=0
    _
  %s9 = ssub.s32 1, %s7
  %s10 = scalar_select 0, %s9, %s7
  $region1: #{_fused_stats.1} parent=0
    #allocation5 [shape = 'u8[32768]{0}', space=vmem, size = 0x8000, scoped, tag = 'input window, operand 0']
    #allocation6 [shape = 's32[2]{0}', space=sflag, size = 0x8, scoped, tag = 'scoped memory for _fused_stats.1']
    #allocation7 [shape = 's32[2]{0}', space=sflag, size = 0x8, scoped, tag = 'scoped memory for _fused_stats.1']
    #allocation8 [shape = 'u8[8192]{0}', space=vmem, size = 0x2000, scoped, tag = 'input window, operand 1']
    #allocation9 [shape = 's32[2]{0}', space=sflag, size = 0x8, scoped, tag = 'scoped memory for _fused_stats.1']
    #allocation10 [shape = 'u8[16384]{0}', space=vmem, size = 0x4000, scoped, tag = 'output window, operand 0']
    %11 = vsyncpa [#allocation6], 0
    %s12 = scalar_lea.sflag [#allocation6], 1
    %13 = vsyncpa %s12, 0
    %14 = vsyncpa [#allocation9], 0
    %s15 = scalar_lea.sflag [#allocation9], 1
    %16 = vsyncpa %s15, 0
    %17 = vsyncpa [#allocation7], 0
    %s18 = scalar_lea.sflag [#allocation7], 1
    %19 = vsyncpa %s18, 0
    loop: start=0, step=1, limit=10
    $region2: #{_fused_stats.1} parent=1 // loop_pre_header
      _
    $region3: #{_fused_stats.1} parent=1 // loop_header
      %s21 = sphi 0, %s25
      %p22 = scmp.ge.s32.totalorder %s21, 10
      %s28 = sphi 0, %s40
      %s29 = sphi 0, %s36
      %s30 = sphi 0, %s28
      %s31 = sphi 0, %s29
      %s32 = sphi 0, %s30
      %s33 = sphi 0, %s31
      %s45 = sphi 0, %s47
      %s48 = sphi 0, %s45
      %s49 = sphi 0, %s48
      %s65 = sphi 0, %s49
      %s73 = sphi 0, %s75
      %s76 = sphi 0, %s73
      %s77 = sphi 0, %s76
      %s93 = sphi 0, %s77
      %s101 = sphi 0, %s103
      %s104 = sphi 0, %s101
      %s105 = sphi 0, %s104
      %s121 = sphi 0, %s105
      %s127 = sphi 0, %s129
      %s130 = sphi 0, %s127
      %s131 = sphi 0, %s130
      %s147 = sphi 0, %s131
      %s153 = sphi 0, %s155
      %s156 = sphi 0, %s153
      %s157 = sphi 0, %s156
      %s173 = sphi 0, %s157
      %s179 = sphi 0, %s181
      %s182 = sphi 0, %s179
      %s183 = sphi 0, %s182
      %s199 = sphi 0, %s183
    $region4: #{_fused_stats.1} parent=1 // loop_header_branch
      %24 = sbr.rel (%p22) target = $region8
    $region5: #{_fused_stats.1} parent=1 // loop_body
      %s26 = ssub.s32 %s21, 1
      %s27 = ssub.s32 %s21, 2
      %s34 = sadd.s32 1, %s29
      %p35 = scmp.ge.s32.totalorder %s34, 2
      %s36 = scalar_select %p35, 0, %s34
      %s37 = sadd.s32 1, %s28
      %s38 = scalar_select %p35, %s37, %s28
      %p39 = scmp.ge.s32.totalorder %s38, 4
      %s40 = scalar_select %p39, 0, %s38
      %s41 = ssub.s32 %s28, %s40
      %s42 = ssub.s32 %s29, %s36
      %s43 = sor.u32 %s41, %s42
      %p44 = scmp.eq.s32.totalorder %s43, 0
      %s46 = sadd.s32 %s45, 1
      %s47 = scalar_select %p44, %s45, %s46
      %p50 = pneg %p44
      %p51 = scmp.eq.s32.totalorder %s21, 7
      %p52 = por %p50, %p51
      %p53 = scmp.ne.s32.totalorder %s45, %s48
      %p54 = scmp.eq.s32.totalorder %s21, 0
      %p55 = por %p53, %p54
      %p56 = scmp.ne.s32.totalorder %s45, %s48
      %p57 = scmp.eq.s32.totalorder %s26, 7
      %p58 = por %p56, %p57
      %p59 = scmp.ne.s32.totalorder %s48, %s49
      %p60 = scmp.eq.s32.totalorder %s26, 0
      %p61 = por %p59, %p60
      %p62 = scmp.ne.s32.totalorder %s48, %s49
      %p63 = scmp.eq.s32.totalorder %s27, 7
      %p64 = por %p62, %p63
      %p66 = scmp.ne.s32.totalorder %s49, %s65
      %p67 = scmp.eq.s32.totalorder %s27, 0
      %p68 = por %p66, %p67
      %s69 = ssub.s32 %s28, %s40
      %s70 = ssub.s32 %s29, %s36
      %s71 = sor.u32 %s69, %s70
      %p72 = scmp.eq.s32.totalorder %s71, 0
      %s74 = sadd.s32 %s73, 1
      %s75 = scalar_select %p72, %s73, %s74
      %p78 = pneg %p72
      %p79 = scmp.eq.s32.totalorder %s21, 7
      %p80 = por %p78, %p79
      %p81 = scmp.ne.s32.totalorder %s73, %s76
      %p82 = scmp.eq.s32.totalorder %s21, 0
      %p83 = por %p81, %p82
      %p84 = scmp.ne.s32.totalorder %s73, %s76
      %p85 = scmp.eq.s32.totalorder %s26, 7
      %p86 = por %p84, %p85
      %p87 = scmp.ne.s32.totalorder %s76, %s77
      %p88 = scmp.eq.s32.totalorder %s26, 0
      %p89 = por %p87, %p88
      %p90 = scmp.ne.s32.totalorder %s76, %s77
      %p91 = scmp.eq.s32.totalorder %s27, 7
      %p92 = por %p90, %p91
      %p94 = scmp.ne.s32.totalorder %s77, %s93
      %p95 = scmp.eq.s32.totalorder %s27, 0
      %p96 = por %p94, %p95
      %s97 = ssub.s32 %s28, %s40
      %s98 = ssub.s32 %s29, %s36
      %s99 = sor.u32 %s97, %s98
      %p100 = scmp.eq.s32.totalorder %s99, 0
      %s102 = sadd.s32 %s101, 1
      %s103 = scalar_select %p100, %s101, %s102
      %p106 = pneg %p100
      %p107 = scmp.eq.s32.totalorder %s21, 7
      %p108 = por %p106, %p107
      %p109 = scmp.ne.s32.totalorder %s101, %s104
      %p110 = scmp.eq.s32.totalorder %s21, 0
      %p111 = por %p109, %p110
      %p112 = scmp.ne.s32.totalorder %s101, %s104
      %p113 = scmp.eq.s32.totalorder %s26, 7
      %p114 = por %p112, %p113
      %p115 = scmp.ne.s32.totalorder %s104, %s105
      %p116 = scmp.eq.s32.totalorder %s26, 0
      %p117 = por %p115, %p116
      %p118 = scmp.ne.s32.totalorder %s104, %s105
      %p119 = scmp.eq.s32.totalorder %s27, 7
      %p120 = por %p118, %p119
      %p122 = scmp.ne.s32.totalorder %s105, %s121
      %p123 = scmp.eq.s32.totalorder %s27, 0
      %p124 = por %p122, %p123
      %s125 = ssub.s32 %s28, %s40
      %p126 = scmp.eq.s32.totalorder %s125, 0
      %s128 = sadd.s32 %s127, 1
      %s129 = scalar_select %p126, %s127, %s128
      %p132 = pneg %p126
      %p133 = scmp.eq.s32.totalorder %s21, 7
      %p134 = por %p132, %p133
      %p135 = scmp.ne.s32.totalorder %s127, %s130
      %p136 = scmp.eq.s32.totalorder %s21, 0
      %p137 = por %p135, %p136
      %p138 = scmp.ne.s32.totalorder %s127, %s130
      %p139 = scmp.eq.s32.totalorder %s26, 7
      %p140 = por %p138, %p139
      %p141 = scmp.ne.s32.totalorder %s130, %s131
      %p142 = scmp.eq.s32.totalorder %s26, 0
      %p143 = por %p141, %p142
      %p144 = scmp.ne.s32.totalorder %s130, %s131
      %p145 = scmp.eq.s32.totalorder %s27, 7
      %p146 = por %p144, %p145
      %p148 = scmp.ne.s32.totalorder %s131, %s147
      %p149 = scmp.eq.s32.totalorder %s27, 0
      %p150 = por %p148, %p149
      %s151 = ssub.s32 %s28, %s40
      %p152 = scmp.eq.s32.totalorder %s151, 0
      %s154 = sadd.s32 %s153, 1
      %s155 = scalar_select %p152, %s153, %s154
      %p158 = pneg %p152
      %p159 = scmp.eq.s32.totalorder %s21, 7
      %p160 = por %p158, %p159
      %p161 = scmp.ne.s32.totalorder %s153, %s156
      %p162 = scmp.eq.s32.totalorder %s21, 0
      %p163 = por %p161, %p162
      %p164 = scmp.ne.s32.totalorder %s153, %s156
      %p165 = scmp.eq.s32.totalorder %s26, 7
      %p166 = por %p164, %p165
      %p167 = scmp.ne.s32.totalorder %s156, %s157
      %p168 = scmp.eq.s32.totalorder %s26, 0
      %p169 = por %p167, %p168
      %p170 = scmp.ne.s32.totalorder %s156, %s157
      %p171 = scmp.eq.s32.totalorder %s27, 7
      %p172 = por %p170, %p171
      %p174 = scmp.ne.s32.totalorder %s157, %s173
      %p175 = scmp.eq.s32.totalorder %s27, 0
      %p176 = por %p174, %p175
      %s177 = ssub.s32 %s28, %s40
      %p178 = scmp.eq.s32.totalorder %s177, 0
      %s180 = sadd.s32 %s179, 1
      %s181 = scalar_select %p178, %s179, %s180
      %p184 = pneg %p178
      %p185 = scmp.eq.s32.totalorder %s21, 7
      %p186 = por %p184, %p185
      %p187 = scmp.ne.s32.totalorder %s179, %s182
      %p188 = scmp.eq.s32.totalorder %s21, 0
      %p189 = por %p187, %p188
      %p190 = scmp.ne.s32.totalorder %s179, %s182
      %p191 = scmp.eq.s32.totalorder %s26, 7
      %p192 = por %p190, %p191
      %p193 = scmp.ne.s32.totalorder %s182, %s183
      %p194 = scmp.eq.s32.totalorder %s26, 0
      %p195 = por %p193, %p194
      %p196 = scmp.ne.s32.totalorder %s182, %s183
      %p197 = scmp.eq.s32.totalorder %s27, 7
      %p198 = por %p196, %p197
      %p200 = scmp.ne.s32.totalorder %s183, %s199
      %p201 = scmp.eq.s32.totalorder %s27, 0
      %p202 = por %p200, %p201
      %p203 = scmp.le.s32.totalorder 1, %s21
      %p204 = scmp.lt.s32.totalorder %s21, 9
      %p205 = pnand %p203, %p204
      %p206 = pneg %p205
      // Predicated region
      $region9: #{_fused_stats.1} parent=5 // pred_check
        _
      $region10: #{_fused_stats.1} parent=5 // pred_check_branch
        %208 = sbr.rel (%p205) target = $region12
      $region11: #{_fused_stats.1} parent=5 // pred_region
        %s209 = ssub.s32 %s21, 1
      $region12: #{_fused_stats.1} parent=5 // pred_fallthru
        _
      %p210 = scmp.lt.s32.totalorder %s21, 8
      // Predicated region
      $region13: #{_fused_stats.1} parent=5 // pred_check
        %p211 = pneg %p210
      $region14: #{_fused_stats.1} parent=5 // pred_check_branch
        %213 = sbr.rel (%p211) target = $region16
      $region15: #{_fused_stats.1} parent=5 // pred_region
        // Predicated region
        $region17: #{_fused_stats.1} parent=15 // pred_check
          %p214 = pneg %p55
        $region18: #{_fused_stats.1} parent=15 // pred_check_branch
          %216 = sbr.rel (%p214) target = $region20
        $region19: #{_fused_stats.1} parent=15 // pred_region
          %s217 = sand.u32 %s45, 1
          %s218 = scalar_lea.sflag [#allocation6], %s217
          %s219 = sand.u32 %s45, 1
          %s220 = smul.addr %s219, 32
          %s221 = scalar_lea.vmem [#allocation5], %s220
          %s222 = smul.u32 4, %s29
          %s224 = ssub.s32 512, 512
          %225 = vsyncadd %s218, %s224
          %s226 = smul.addr %s28, 8
          %s227 = sadd.s32 %s222, %s226
          %s228 = smul.addr %s227, 128
          %s229 = scalar_lea.hbm %s0, %s228
          %s230 = sshll.u32 %s221, 4
          %s231 = int_to_ptr.vmem [resolvable:$true] %s230
          %236 = dma.hbm_to_vmem [thread:$0]  %s229, 512, %s231, %s218, 128, 128, 8
        $region20: #{_fused_stats.1} parent=15 // pred_fallthru
          _
        // Predicated region
        $region21: #{_fused_stats.1} parent=15 // pred_check
          %p237 = pneg %p83
        $region22: #{_fused_stats.1} parent=15 // pred_check_branch
          %239 = sbr.rel (%p237) target = $region24
        $region23: #{_fused_stats.1} parent=15 // pred_region
          %s240 = sand.u32 %s73, 1
          %s241 = scalar_lea.sflag [#allocation9], %s240
          %s242 = sand.u32 %s73, 1
          %s243 = smul.addr %s242, 8
          %s244 = scalar_lea.vmem [#allocation8], %s243
          %s246 = ssub.s32 128, 128
          %247 = vsyncadd %s241, %s246
          %s248 = smul.addr %s28, 2
          %s249 = sadd.s32 %s29, %s248
          %s250 = smul.addr %s249, 128
          %s251 = scalar_lea.hbm %s1, %s250
          %s253 = sshll.u32 %s244, 4
          %s254 = int_to_ptr.vmem [resolvable:$true] %s253
          %256 = dma.hbm_to_vmem [thread:$0]  %s251, 128, %s254, %s241
        $region24: #{_fused_stats.1} parent=15 // pred_fallthru
          _
      $region16: #{_fused_stats.1} parent=5 // pred_fallthru
        _
      %p257 = scmp.le.s32.totalorder 1, %s21
      %p258 = scmp.lt.s32.totalorder %s21, 9
      %p259 = pnand %p257, %p258
      %p260 = pneg %p259
      // Predicated region
      $region25: #{_fused_stats.1} parent=5 // pred_check
        _
      $region26: #{_fused_stats.1} parent=5 // pred_check_branch
        %262 = sbr.rel (%p259) target = $region28
      $region27: #{_fused_stats.1} parent=5 // pred_region
        %s263 = ssub.s32 %s21, 1
        %s264 = sand.u32 %s48, 1
        %s265 = scalar_lea.sflag [#allocation6], %s264
        %s266 = sand.u32 %s48, 1
        %s267 = smul.addr %s266, 32
        %s268 = scalar_lea.vmem [#allocation5], %s267
        // Predicated region
        $region29: #{_fused_stats.1} parent=27 // pred_check
          %p269 = pneg %p61
        $region30: #{_fused_stats.1} parent=27 // pred_check_branch
          %271 = sbr.rel (%p269) target = $region32
        $region31: #{_fused_stats.1} parent=27 // pred_region
          %272 = dma.done %s265, 512
        $region32: #{_fused_stats.1} parent=27 // pred_fallthru
          _
        %s273 = sand.u32 %s76, 1
        %s274 = scalar_lea.sflag [#allocation9], %s273
        %s275 = sand.u32 %s76, 1
        %s276 = smul.addr %s275, 8
        %s277 = scalar_lea.vmem [#allocation8], %s276
        // Predicated region
        $region33: #{_fused_stats.1} parent=27 // pred_check
          %p278 = pneg %p89
        $region34: #{_fused_stats.1} parent=27 // pred_check_branch
          %280 = sbr.rel (%p278) target = $region36
        $region35: #{_fused_stats.1} parent=27 // pred_region
          %281 = dma.done %s274, 128
        $region36: #{_fused_stats.1} parent=27 // pred_fallthru
          _
        %s282 = sand.u32 %s48, 1
        %s283 = scalar_lea.sflag [#allocation6], %s282
        %s284 = sand.u32 %s48, 1
        %s285 = smul.addr %s284, 32
        %s286 = scalar_lea.vmem [#allocation5], %s285
        %p287 = pneg %p61
        %p288 = pneg %p58
        %s289 = sand.u32 %s76, 1
        %s290 = scalar_lea.sflag [#allocation9], %s289
        %s291 = sand.u32 %s76, 1
        %s292 = smul.addr %s291, 8
        %s293 = scalar_lea.vmem [#allocation8], %s292
        %p294 = pneg %p89
        %p295 = pneg %p86
        %p296 = pneg %p117
        %p297 = pneg %p114
        %s298 = sand.u32 %s104, 1
        %s299 = scalar_lea.sflag [#allocation7], %s298
        %s300 = sand.u32 %s104, 1
        %s301 = smul.addr %s300, 16
        %s302 = scalar_lea.vmem [#allocation10], %s301
        %p303 = pneg %p143
        %p304 = pneg %p140
        %p305 = scmp.lt.s32.totalorder %s30, 3
        %s306 = scalar_select %p305, %s30, 3
        %s307 = smul.addr %s306, 8
        %s308 = scalar_lea.vmem %s3, %s307
        %p309 = pneg %p169
        %p310 = pneg %p166
        %p311 = scmp.lt.s32.totalorder %s30, 3
        %s312 = scalar_select %p311, %s30, 3
        %s313 = smul.addr %s312, 8
        %s314 = scalar_lea.vmem %s4, %s313
        %p315 = pneg %p195
        %p316 = pneg %p192
        %p317 = scmp.lt.s32.totalorder %s30, 3
        %s318 = scalar_select %p317, %s30, 3
        %s319 = smul.addr %s318, 8
        %s320 = scalar_lea.vmem %s5, %s319
        %s321 = smul.u32 4, %s31
        %s322 = smul.u32 4, %s31
        %p323 = scmp.lt.s32.totalorder %s30, 3
        %s324 = scalar_select %p323, %s30, 3
        %s325 = smul.addr %s324, 8
        %s326 = scalar_lea.vmem %s3, %s325
        %p327 = scmp.lt.s32.totalorder %s30, 3
        %s328 = scalar_select %p327, %s30, 3
        %s329 = smul.addr %s328, 8
        %s330 = scalar_lea.vmem %s4, %s329
        %p331 = scmp.lt.s32.totalorder %s30, 3
        %s332 = scalar_select %p331, %s30, 3
        %s333 = smul.addr %s332, 8
        %s334 = scalar_lea.vmem %s5, %s333
        %p335 = scmp.eq.s32.totalorder %s31, 0
        // Predicated region
        $region37: #{_fused_stats.1} parent=27 // pred_check
          %p336 = pneg %p335
        $region38: #{_fused_stats.1} parent=27 // pred_check_branch
          %338 = sbr.rel (%p336) target = $region40
        $region39: #{_fused_stats.1} parent=27 // pred_region
          %339 = vst [vmem:[#allocation2] sm:$0xff] 0.0
          %340 = vst [vmem:[#allocation3] sm:$0xff] 0.0
          %341 = vst [vmem:[#allocation4] sm:$0xff] 0.0
        $region40: #{_fused_stats.1} parent=27 // pred_fallthru
          _
        %v342 = vld [vmem:[%s268] sm:$0xff]
        %v343 = vld [vmem:[%s268 + $0x8] sm:$0xff]
        %v344 = vld [vmem:[%s268 + $0x10] sm:$0xff]
        %v345 = vld [vmem:[%s268 + $0x18] sm:$0xff]
        %v346 = vld [vmem:[%s277] sm:$0xff]
        %v347 = vunpack.c.0.s8 %v346
        %v348 = vunpack.c.1.s8 %v346
        %v349 = vunpack.c.2.s8 %v346
        %v350 = vunpack.c.3.s8 %v346
        %v351 = vand.u32 %v347, 255
        %v352 = vand.u32 %v348, 255
        %v353 = vand.u32 %v349, 255
        %v354 = vand.u32 %v350, 255
        %v355 = vcvt.s32.f32 %v351
        %v356 = vcvt.s32.f32 %v352
        %v357 = vcvt.s32.f32 %v353
        %v358 = vcvt.s32.f32 %v354
        %v359 = vmax.f32 %v342, 0.0
        %v360 = vmax.f32 %v343, 0.0
        %v361 = vmax.f32 %v344, 0.0
        %v362 = vmax.f32 %v345, 0.0
        %v363 = vand.u32 2147483647, %v342
        %v364 = vand.u32 2147483647, %v343
        %v365 = vand.u32 2147483647, %v344
        %v366 = vand.u32 2147483647, %v345
        %v367 = vsub.f32 0.0, %v363
        %v368 = vsub.f32 0.0, %v364
        %v369 = vsub.f32 0.0, %v365
        %v370 = vsub.f32 0.0, %v366
        %v371 = vmul.f32 %v367, 1.442695
        %v372 = vpow.pop %v371
        %v373 = vmul.f32 %v368, 1.442695
        %v374 = vpow.pop %v373
        %v375 = vmul.f32 %v369, 1.442695
        %v376 = vpow.pop %v375
        %v377 = vmul.f32 %v370, 1.442695
        %v378 = vpow.pop %v377
        %v379 = vadd.f32 %v372, 1.0
        %v380 = vadd.f32 %v374, 1.0
        %v381 = vadd.f32 %v376, 1.0
        %v382 = vadd.f32 %v378, 1.0
        %v383 = vlog2.pop %v379
        %v384 = vmul.f32 %v383, 0.6931472
        %v385 = vlog2.pop %v380
        %v386 = vmul.f32 %v385, 0.6931472
        %v387 = vlog2.pop %v381
        %v388 = vmul.f32 %v387, 0.6931472
        %v389 = vlog2.pop %v382
        %v390 = vmul.f32 %v389, 0.6931472
        %v391 = vadd.f32 %v359, %v384
        %v392 = vadd.f32 %v360, %v386
        %v393 = vadd.f32 %v361, %v388
        %v394 = vadd.f32 %v362, %v390
        %v395 = vsub.f32 %v342, %v391
        %v396 = vsub.f32 %v343, %v392
        %v397 = vsub.f32 %v344, %v393
        %v398 = vsub.f32 %v345, %v394
        %v399 = vmul.f32 %v395, 1.442695
        %v400 = vpow.pop %v399
        %v401 = vmul.f32 %v396, 1.442695
        %v402 = vpow.pop %v401
        %v403 = vmul.f32 %v397, 1.442695
        %v404 = vpow.pop %v403
        %v405 = vmul.f32 %v398, 1.442695
        %v406 = vpow.pop %v405
        %v407 = vpack.c.bf16 %v402, %v400
        %v408 = vpack.c.bf16 %v406, %v404
        %v411 = vunpack.c.l.b16 %v407
        %v412 = vunpack.c.h.b16 %v407
        %v413 = vunpack.c.l.b16 %v408
        %v414 = vunpack.c.h.b16 %v408
        %v415 = vpack.c.b16 %v411, %v411
        %v416 = vpack.c.b16 %v412, %v412
        %v417 = vpack.c.b16 %v413, %v413
        %v418 = vpack.c.b16 %v414, %v414
        %423 = vst [vmem:[%s302] sm:$0xf] %v415
        %424 = vst [vmem:[%s302 + $0x4] sm:$0xf] %v416
        %425 = vst [vmem:[%s302 + $0x8] sm:$0xf] %v417
        %426 = vst [vmem:[%s302 + $0xc] sm:$0xf] %v418
        %vm427 = vcmp.gt.f32.partialorder %v342, 0.0
        %vm428 = vcmp.gt.f32.partialorder %v343, 0.0
        %vm429 = vcmp.gt.f32.partialorder %v344, 0.0
        %vm430 = vcmp.gt.f32.partialorder %v345, 0.0
        %v431 = vsel %vm427, 1, 0
        %v432 = vsel %vm428, 1, 0
        %v433 = vsel %vm429, 1, 0
        %v434 = vsel %vm430, 1, 0
        %v435 = vcvt.s32.f32 %v431
        %v436 = vcvt.s32.f32 %v432
        %v437 = vcvt.s32.f32 %v433
        %v438 = vcvt.s32.f32 %v434
        %vm439 = vcmp.gt.f32.partialorder %v355, 0.5
        %vm440 = vcmp.gt.f32.partialorder %v356, 0.5
        %vm441 = vcmp.gt.f32.partialorder %v357, 0.5
        %vm442 = vcmp.gt.f32.partialorder %v358, 0.5
        %v443 = vsel %vm439, 1, 0
        %v444 = vsel %vm440, 1, 0
        %v445 = vsel %vm441, 1, 0
        %v446 = vsel %vm442, 1, 0
        %v447 = vcvt.s32.f32 %v443
        %v448 = vcvt.s32.f32 %v444
        %v449 = vcvt.s32.f32 %v445
        %v450 = vcvt.s32.f32 %v446
        %v451 = vmul.f32 %v435, %v447
        %v452 = vmul.f32 %v436, %v448
        %v453 = vmul.f32 %v437, %v449
        %v454 = vmul.f32 %v438, %v450
        %v455 = vld [vmem:[#allocation2] sm:$0xff]
        %v456 = vadd.f32 %v451, %v452
        %v457 = vadd.f32 %v456, %v453
        %v458 = vadd.f32 %v457, %v454
        %v459 = vadd.f32 %v455, %v458
        %460 = vst [vmem:[#allocation2] sm:$0xff] %v459
        %v461 = vadd.f32 %v435, %v447
        %v462 = vadd.f32 %v436, %v448
        %v463 = vadd.f32 %v437, %v449
        %v464 = vadd.f32 %v438, %v450
        %vm465 = vcmp.gt.f32.partialorder %v461, 0.5
        %vm466 = vcmp.gt.f32.partialorder %v462, 0.5
        %vm467 = vcmp.gt.f32.partialorder %v463, 0.5
        %vm468 = vcmp.gt.f32.partialorder %v464, 0.5
        %v469 = vsel %vm465, 1, 0
        %v470 = vsel %vm466, 1, 0
        %v471 = vsel %vm467, 1, 0
        %v472 = vsel %vm468, 1, 0
        %v473 = vcvt.s32.f32 %v469
        %v474 = vcvt.s32.f32 %v470
        %v475 = vcvt.s32.f32 %v471
        %v476 = vcvt.s32.f32 %v472
        %v477 = vld [vmem:[#allocation3] sm:$0xff]
        %v478 = vadd.f32 %v473, %v474
        %v479 = vadd.f32 %v478, %v475
        %v480 = vadd.f32 %v479, %v476
        %v481 = vadd.f32 %v477, %v480
        %482 = vst [vmem:[#allocation3] sm:$0xff] %v481
        %v483 = vmul.f32 %v342, %v355
        %v484 = vmul.f32 %v343, %v356
        %v485 = vmul.f32 %v344, %v357
        %v486 = vmul.f32 %v345, %v358
        %v487 = vsub.f32 %v391, %v483
        %v488 = vsub.f32 %v392, %v484
        %v489 = vsub.f32 %v393, %v485
        %v490 = vsub.f32 %v394, %v486
        %v491 = vld [vmem:[#allocation4] sm:$0xff]
        %v492 = vadd.f32 %v487, %v488
        %v493 = vadd.f32 %v492, %v489
        %v494 = vadd.f32 %v493, %v490
        %v495 = vadd.f32 %v491, %v494
        %496 = vst [vmem:[#allocation4] sm:$0xff] %v495
        %p497 = scmp.eq.s32.totalorder %s31, 1
        // Predicated region
        $region41: #{_fused_stats.1} parent=27 // pred_check
          %p498 = pneg %p497
        $region42: #{_fused_stats.1} parent=27 // pred_check_branch
          %500 = sbr.rel (%p498) target = $region44
        $region43: #{_fused_stats.1} parent=27 // pred_region
          %v501 = vld [vmem:[#allocation2] sm:$0xff]
          %502 = vadd.xlane.f32.xlu0 %v501
          %v503 = vpop.xlane.xlu0 %502
          %v504 = vrot.slane %v503, 4
          %v505 = vadd.f32 %v503, %v504
          %v506 = vrot.slane %v505, 2
          %v507 = vadd.f32 %v505, %v506
          %v508 = vrot.slane %v507, 1
          %v509 = vadd.f32 %v507, %v508
          %510 = vst [vmem:[%s326] sm:$0xff] %v509
          %v511 = vld [vmem:[#allocation3] sm:$0xff]
          %512 = vadd.xlane.f32.xlu0 %v511
          %v513 = vpop.xlane.xlu0 %512
          %v514 = vrot.slane %v513, 4
          %v515 = vadd.f32 %v513, %v514
          %v516 = vrot.slane %v515, 2
          %v517 = vadd.f32 %v515, %v516
          %v518 = vrot.slane %v517, 1
          %v519 = vadd.f32 %v517, %v518
          %520 = vst [vmem:[%s330] sm:$0xff] %v519
          %v521 = vld [vmem:[#allocation4] sm:$0xff]
          %522 = vadd.xlane.f32.xlu0 %v521
          %v523 = vpop.xlane.xlu0 %522
          %v524 = vrot.slane %v523, 4
          %v525 = vadd.f32 %v523, %v524
          %v526 = vrot.slane %v525, 2
          %v527 = vadd.f32 %v525, %v526
          %v528 = vrot.slane %v527, 1
          %v529 = vadd.f32 %v527, %v528
          %v530 = vmul.f32 %v529, 3.0517578e-05
          %531 = vst [vmem:[%s334] sm:$0xff] %v530
        $region44: #{_fused_stats.1} parent=27 // pred_fallthru
          _
        %s532 = sand.u32 %s104, 1
        %s533 = scalar_lea.sflag [#allocation7], %s532
        %s534 = sand.u32 %s104, 1
        %s535 = smul.addr %s534, 16
        %s536 = scalar_lea.vmem [#allocation10], %s535
        %p537 = scmp.lt.s32.totalorder %s30, 3
        %s538 = scalar_select %p537, %s30, 3
        %s539 = smul.addr %s538, 8
        %s540 = scalar_lea.vmem %s3, %s539
        %p541 = scmp.lt.s32.totalorder %s30, 3
        %s542 = scalar_select %p541, %s30, 3
        %s543 = smul.addr %s542, 8
        %s544 = scalar_lea.vmem %s4, %s543
        %p545 = scmp.lt.s32.totalorder %s30, 3
        %s546 = scalar_select %p545, %s30, 3
        %s547 = smul.addr %s546, 8
        %s548 = scalar_lea.vmem %s5, %s547
        // Predicated region
        $region45: #{_fused_stats.1} parent=27 // pred_check
          %p549 = pneg %p114
        $region46: #{_fused_stats.1} parent=27 // pred_check_branch
          %551 = sbr.rel (%p549) target = $region48
        $region47: #{_fused_stats.1} parent=27 // pred_region
          %s552 = smul.u32 4, %s31
          %s554 = ssub.s32 256, 256
          %555 = vsyncadd %s533, %s554
          %s556 = smul.addr %s30, 8
          %s557 = sadd.s32 %s552, %s556
          %s558 = smul.addr %s557, 64
          %s559 = scalar_lea.hbm %s2, %s558
          %s560 = sshll.u32 %s536, 4
          %s561 = int_to_ptr.vmem [resolvable:$true] %s560
          %566 = dma.vmem_to_hbm [thread:$0]  %s561, 256, %s559, %s533, 64, 64, 4
        $region48: #{_fused_stats.1} parent=27 // pred_fallthru
          _
        // Predicated region
        $region49: #{_fused_stats.1} parent=27 // pred_check
          %p567 = pneg %p140
        $region50: #{_fused_stats.1} parent=27 // pred_check_branch
          %569 = sbr.rel (%p567) target = $region52
        $region51: #{_fused_stats.1} parent=27 // pred_region
          _
        $region52: #{_fused_stats.1} parent=27 // pred_fallthru
          _
        // Predicated region
        $region53: #{_fused_stats.1} parent=27 // pred_check
          %p570 = pneg %p166
        $region54: #{_fused_stats.1} parent=27 // pred_check_branch
          %572 = sbr.rel (%p570) target = $region56
        $region55: #{_fused_stats.1} parent=27 // pred_region
          _
        $region56: #{_fused_stats.1} parent=27 // pred_fallthru
          _
        // Predicated region
        $region57: #{_fused_stats.1} parent=27 // pred_check
          %p573 = pneg %p192
        $region58: #{_fused_stats.1} parent=27 // pred_check_branch
          %575 = sbr.rel (%p573) target = $region60
        $region59: #{_fused_stats.1} parent=27 // pred_region
          _
        $region60: #{_fused_stats.1} parent=27 // pred_fallthru
          _
      $region28: #{_fused_stats.1} parent=5 // pred_fallthru
        _
      %p576 = scmp.le.s32.totalorder 2, %s21
      // Predicated region
      $region61: #{_fused_stats.1} parent=5 // pred_check
        %p577 = pneg %p576
      $region62: #{_fused_stats.1} parent=5 // pred_check_branch
        %579 = sbr.rel (%p577) target = $region64
      $region63: #{_fused_stats.1} parent=5 // pred_region
        %s580 = ssub.s32 %s21, 2
        // Predicated region
        $region65: #{_fused_stats.1} parent=63 // pred_check
          %p581 = pneg %p120
        $region66: #{_fused_stats.1} parent=63 // pred_check_branch
          %583 = sbr.rel (%p581) target = $region68
        $region67: #{_fused_stats.1} parent=63 // pred_region
          %s584 = sand.u32 %s105, 1
          %s585 = scalar_lea.sflag [#allocation7], %s584
          %s586 = sand.u32 %s105, 1
          %s587 = smul.addr %s586, 16
          %s588 = scalar_lea.vmem [#allocation10], %s587
          %589 = dma.done %s585, 256
        $region68: #{_fused_stats.1} parent=63 // pred_fallthru
          _
        // Predicated region
        $region69: #{_fused_stats.1} parent=63 // pred_check
          %p590 = pneg %p146
        $region70: #{_fused_stats.1} parent=63 // pred_check_branch
          %592 = sbr.rel (%p590) target = $region72
        $region71: #{_fused_stats.1} parent=63 // pred_region
          %p593 = scmp.lt.s32.totalorder %s32, 3
          %s594 = scalar_select %p593, %s32, 3
          %s595 = smul.addr %s594, 8
          %s596 = scalar_lea.vmem %s3, %s595
        $region72: #{_fused_stats.1} parent=63 // pred_fallthru
          _
        // Predicated region
        $region73: #{_fused_stats.1} parent=63 // pred_check
          %p597 = pneg %p172
        $region74: #{_fused_stats.1} parent=63 // pred_check_branch
          %599 = sbr.rel (%p597) target = $region76
        $region75: #{_fused_stats.1} parent=63 // pred_region
          %p600 = scmp.lt.s32.totalorder %s32, 3
          %s601 = scalar_select %p600, %s32, 3
          %s602 = smul.addr %s601, 8
          %s603 = scalar_lea.vmem %s4, %s602
        $region76: #{_fused_stats.1} parent=63 // pred_fallthru
          _
        // Predicated region
        $region77: #{_fused_stats.1} parent=63 // pred_check
          %p604 = pneg %p198
        $region78: #{_fused_stats.1} parent=63 // pred_check_branch
          %606 = sbr.rel (%p604) target = $region80
        $region79: #{_fused_stats.1} parent=63 // pred_region
          %p607 = scmp.lt.s32.totalorder %s32, 3
          %s608 = scalar_select %p607, %s32, 3
          %s609 = smul.addr %s608, 8
          %s610 = scalar_lea.vmem %s5, %s609
        $region80: #{_fused_stats.1} parent=63 // pred_fallthru
          _
      $region64: #{_fused_stats.1} parent=5 // pred_fallthru
        _
    $region6: #{_fused_stats.1} parent=1 // loop_footer
      %s25 = sadd.s32 1, %s21
    $region7: #{_fused_stats.1} parent=1 // loop_footer_branch
      %20 = sbr.rel target = $region3
    $region8: #{_fused_stats.1} parent=1 // loop_exit
      _
    %611 = vsyncpa [#allocation6], 1
    %s612 = scalar_lea.sflag [#allocation6], 1
    %613 = vsyncpa %s612, 1
    %614 = vsyncpa [#allocation9], 1
    %s615 = scalar_lea.sflag [#allocation9], 1
    %616 = vsyncpa %s615, 1
    %617 = vsyncpa [#allocation7], 1
    %s618 = scalar_lea.sflag [#allocation7], 1
    %619 = vsyncpa %s618, 1

</llo_original>
